<compile_context>
chip_gen: v5e
topology: v5e:2x2
jax: 0.10.0
libtpu: 0.0.40
codegen_flags: <defaults>
</compile_context>

<pallas_src>
import jax
import jax.numpy as jnp
from jax.experimental import pallas as pl
from jax.experimental.pallas import tpu as pltpu


def mlp_kernel(x_ref, w1_ref, b1_ref, w2_ref, b2_ref, o_ref):
    h_idx = pl.program_id(1)

    # The output block index is h-invariant, so o_ref stays resident in VMEM
    # across the whole hidden reduction: initialize it with the fc2 bias once.
    @pl.when(h_idx == 0)
    def _():
        o_ref[...] = jnp.broadcast_to(b2_ref[...], o_ref.shape).astype(
            o_ref.dtype)

    # Cast the activation tile to bf16 in-kernel (cheap, hidden under MXU).
    xb = x_ref[...].astype(jnp.bfloat16)

    # fc1 partial: full-D contraction against this hidden-column block.
    # bf16 operands on the MXU, f32 accumulation.
    h = jnp.dot(xb, w1_ref[...], preferred_element_type=jnp.float32)
    h = h + b1_ref[...]                       # f32 bias add (this H block only)

    # tanh GELU: transcendental goes to the EUP slot; within bf16-rounding
    # tolerance of torch.nn.GELU()'s exact erf form (intermediate is rounded to
    # bf16 before fc2 anyway).
    h = jax.nn.gelu(h, approximate=True)

    # dropout(p=0.0) is identity — no-op.

    # fc2 partial contribution, accumulated directly into the resident f32
    # output block (no separate accumulator scratch).
    o_ref[...] += jnp.dot(h.astype(jnp.bfloat16), w2_ref[...],
                          preferred_element_type=jnp.float32)


def _round_up(a, m):
    return ((a + m - 1) // m) * m


def mlp_forward(x, w1, b1, w2, b2, *, tile_m=512, tile_h=None):
    """x: (batch, seq, embed). w1: (embed, hidden), b1: (hidden,),
    w2: (hidden, embed), b2: (embed,)."""
    B, S, D = x.shape
    H = w1.shape[1]
    N = B * S
    x2d = x.reshape(N, D)

    # --- VMEM limit: stay below physical capacity (64 MiB per TC on v7x). ---
    try:
        vmem_cap = int(getattr(pltpu.get_tpu_info(), "vmem_capacity_bytes",
                               128 * 1024 * 1024))
    except Exception:  # pragma: no cover - conservative fallback
        vmem_cap = 128 * 1024 * 1024
    vmem_limit = (vmem_cap * 7) // 8          # ~56 MiB v7x, ~112 MiB v5e/v6e

    # --- Token tiling: multiples of 16 (bf16 sublane packing). ---
    N_al = _round_up(N, 16)                   # tiny alignment pad only if needed
    if N_al != N:
        x2d = jnp.pad(x2d, ((0, N_al - N), (0, 0)))
    tm = max(16, min(_round_up(tile_m, 16), N_al))
    # Megacore: prefer >=2 token tiles so the parallel axis shards across TCs.
    if N_al >= 512:
        tm = min(tm, _round_up(pl.cdiv(N_al, 2), 16))

    # --- Hidden tiling: keep W1+W2 fully resident when they fit VMEM. ---
    if H % 128 != 0:
        tile_h = H                            # irregular H: single step
    elif tile_h is None:
        budget = int(vmem_limit * 0.75)
        weight_bytes = 2 * (2 * D * H * 2)          # w1 + w2, bf16, dbl-buffered
        act_bytes = 2 * (tm * D * 4 + tm * D * 4)   # x + out blocks, f32, dbl-buf
        bias_bytes = 2 * (H + D) * 4
        tile_h = H if weight_bytes + act_bytes + bias_bytes <= budget else 512
    tile_h = min(tile_h, H)
    if tile_h < H:
        tile_h = max(128, (tile_h // 128) * 128)
        while H % tile_h:
            tile_h -= 128
    # TODO(synk): when tile_h == H (grid-invariant weights), pipeline_mode=
    # pl.Buffered(1) on the w1/w2/b1 specs would halve their buffer count.

    # Weights pre-cast to bf16 (re-read many times; ideally persisted as bf16
    # by the caller so this cast is not paid per forward).
    w1b = w1.astype(jnp.bfloat16)
    w2b = w2.astype(jnp.bfloat16)
    b1_2d = b1.reshape(1, H).astype(jnp.float32)
    b2_2d = b2.reshape(1, D).astype(jnp.float32)

    grid = (pl.cdiv(N_al, tm), H // tile_h)

    out2d = pl.pallas_call(
        mlp_kernel,
        out_shape=jax.ShapeDtypeStruct((N_al, D), jnp.float32),
        grid_spec=pltpu.PrefetchScalarGridSpec(
            num_scalar_prefetch=0,
            grid=grid,
            in_specs=[
                pl.BlockSpec((tm, D), lambda i, h: (i, 0)),        # x tile
                pl.BlockSpec((D, tile_h), lambda i, h: (0, h)),    # w1 cols
                pl.BlockSpec((1, tile_h), lambda i, h: (0, h)),    # b1 slice
                pl.BlockSpec((tile_h, D), lambda i, h: (h, 0)),    # w2 rows
                pl.BlockSpec((1, D), lambda i, h: (0, 0)),         # b2
            ],
            out_specs=pl.BlockSpec((tm, D), lambda i, h: (i, 0)),
        ),
        compiler_params=pltpu.CompilerParams(
            dimension_semantics=("parallel", "arbitrary"),
            vmem_limit_bytes=vmem_limit),
    )(x2d, w1b, b1_2d, w2b, b2_2d)

    out2d = out2d[:N]
    if out2d.dtype != x.dtype:
        out2d = out2d.astype(x.dtype)
    return out2d.reshape(B, S, D)


if __name__ == "__main__":
    # Small shapes consistent with the module: embed_dim=128, mlp_ratio=4.0
    batch, seq, embed_dim = 2, 8, 128
    hidden_dim = int(embed_dim * 4.0)      # 512

    key = jax.random.PRNGKey(0)
    kx, kw1, kb1, kw2, kb2 = jax.random.split(key, 5)

    x = jax.random.normal(kx, (batch, seq, embed_dim), dtype=jnp.float32)
    # Deterministic parameter init (PyTorch stores (out, in); we keep (in, out)).
    w1 = jax.random.normal(kw1, (embed_dim, hidden_dim), dtype=jnp.float32) * 0.02
    b1 = jax.random.normal(kb1, (hidden_dim,), dtype=jnp.float32) * 0.02
    w2 = jax.random.normal(kw2, (hidden_dim, embed_dim), dtype=jnp.float32) * 0.02
    b2 = jax.random.normal(kb2, (embed_dim,), dtype=jnp.float32) * 0.02

    # Pure-JAX reference with matching numerics (bf16 MXU operands, tanh GELU).
    hp = jax.lax.Precision.HIGHEST
    xf = x.astype(jnp.bfloat16).astype(jnp.float32)
    w1f = w1.astype(jnp.bfloat16).astype(jnp.float32)
    w2f = w2.astype(jnp.bfloat16).astype(jnp.float32)
    h_ref = jax.nn.gelu(jnp.matmul(xf, w1f, precision=hp) + b1,
                        approximate=True)
    h_ref = h_ref.astype(jnp.bfloat16).astype(jnp.float32)
    ref = jnp.matmul(h_ref, w2f, precision=hp) + b2

    # 1) Default path: weights fully resident (tile_h == H, single H step).
    y = mlp_forward(x, w1, b1, w2, b2)
    jax.block_until_ready(y)
    assert y.shape == ref.shape and y.dtype == ref.dtype
    assert jnp.allclose(y, ref, atol=5e-3, rtol=5e-3), "mismatch (resident path)"

    # 2) H-tiled reduction path: exercises the o_ref accumulator across 2 steps.
    y2 = mlp_forward(x, w1, b1, w2, b2, tile_m=16, tile_h=256)
    jax.block_until_ready(y2)
    assert jnp.allclose(y2, ref, atol=5e-3, rtol=5e-3), "mismatch (tiled path)"

    print("KERNEL_OK")
</pallas_src>

<mosaic_0001>
module attributes {stable_mosaic.version = 11 : i64} {
  func.func @mlp_kernel(%arg0: i32, %arg1: i32, %arg2: memref<16x128xf32, #tpu.memory_space<vmem>>, %arg3: memref<128x512xbf16, #tpu.memory_space<vmem>>, %arg4: memref<1x512xf32, #tpu.memory_space<vmem>>, %arg5: memref<512x128xbf16, #tpu.memory_space<vmem>>, %arg6: memref<1x128xf32, #tpu.memory_space<vmem>>, %arg7: memref<16x128xf32, #tpu.memory_space<vmem>>) attributes {dimension_semantics = [#tpu.dimension_semantics<parallel>, #tpu.dimension_semantics<arbitrary>], iteration_bounds = array<i64: 1, 1>, scalar_prefetch = 0 : i64, scratch_operands = 0 : i64, tpu.core_type = #tpu.core_type<tc>, window_params = [{transform_indices = @transform_0, window_bounds = array<i64: 16, 128>}, {transform_indices = @transform_1, window_bounds = array<i64: 128, 512>}, {transform_indices = @transform_2, window_bounds = array<i64: 1, 512>}, {transform_indices = @transform_3, window_bounds = array<i64: 512, 128>}, {pipeline_mode = #tpu.pipeline_mode<synchronous>, transform_indices = @transform_4, window_bounds = array<i64: 1, 128>}, {transform_indices = @transform_5, window_bounds = array<i64: 16, 128>}]} {
    %c0_i32 = arith.constant 0 : i32
    %0 = arith.cmpi eq, %arg1, %c0_i32 : i32
    %1 = arith.extui %0 : i1 to i32
    %c0_i32_0 = arith.constant 0 : i32
    %2 = arith.cmpi ne, %1, %c0_i32_0 : i32
    scf.if %2 {
      %c0_17 = arith.constant 0 : index
      %c0_18 = arith.constant 0 : index
      %29 = vector.load %arg6[%c0_17, %c0_18] : memref<1x128xf32, #tpu.memory_space<vmem>>, vector<1x128xf32>
      %30 = vector.shape_cast %29 : vector<1x128xf32> to vector<1x128xf32>
      %31 = vector.broadcast %30 : vector<1x128xf32> to vector<16x128xf32>
      %c0_19 = arith.constant 0 : index
      %c0_20 = arith.constant 0 : index
      %32 = vector.load %arg7[%c0_19, %c0_20] : memref<16x128xf32, #tpu.memory_space<vmem>>, vector<16x128xf32>
      tpu.vector_store %arg7[%c0_19, %c0_20], %31 {strides = array<i32>} : memref<16x128xf32, #tpu.memory_space<vmem>>, vector<16x128xf32>,
    } else {
    }
    %c0 = arith.constant 0 : index
    %c0_1 = arith.constant 0 : index
    %3 = vector.load %arg2[%c0, %c0_1] : memref<16x128xf32, #tpu.memory_space<vmem>>, vector<16x128xf32>
    %4 = arith.truncf %3 : vector<16x128xf32> to vector<16x128xbf16>
    %c0_2 = arith.constant 0 : index
    %c0_3 = arith.constant 0 : index
    %5 = vector.load %arg3[%c0_2, %c0_3] : memref<128x512xbf16, #tpu.memory_space<vmem>>, vector<128x512xbf16>
    %cst = arith.constant dense<0.000000e+00> : vector<16x512xf32>
    %6 = tpu.matmul %4, %5, %cst {dimension_numbers = #tpu.dot_dimension_numbers<[1], [0], [0], [1], [0, 0, 1, 1], [], []>} : vector<16x128xbf16>, vector<128x512xbf16>, vector<16x512xf32> -> vector<16x512xf32>
    %c0_4 = arith.constant 0 : index
    %c0_5 = arith.constant 0 : index
    %7 = vector.load %arg4[%c0_4, %c0_5] : memref<1x512xf32, #tpu.memory_space<vmem>>, vector<1x512xf32>
    %8 = vector.broadcast %7 : vector<1x512xf32> to vector<16x512xf32>
    %9 = arith.addf %6, %8 : vector<16x512xf32>
    %10 = arith.mulf %9, %9 : vector<16x512xf32>
    %11 = arith.mulf %9, %10 : vector<16x512xf32>
    %cst_6 = arith.constant 4.471500e-02 : f32
    %12 = vector.broadcast %cst_6 : f32 to vector<16x512xf32>
    %13 = arith.mulf %12, %11 : vector<16x512xf32>
    %14 = arith.addf %9, %13 : vector<16x512xf32>
    %cst_7 = arith.constant 0.797884583 : f32
    %15 = vector.broadcast %cst_7 : f32 to vector<16x512xf32>
    %16 = arith.mulf %15, %14 : vector<16x512xf32>
    %17 = math.tanh %16 : vector<16x512xf32>
    %cst_8 = arith.constant 1.000000e+00 : f32
    %18 = vector.broadcast %cst_8 : f32 to vector<16x512xf32>
    %19 = arith.addf %18, %17 : vector<16x512xf32>
    %cst_9 = arith.constant 5.000000e-01 : f32
    %20 = vector.broadcast %cst_9 : f32 to vector<16x512xf32>
    %21 = arith.mulf %20, %19 : vector<16x512xf32>
    %22 = arith.mulf %9, %21 : vector<16x512xf32>
    %c0_10 = arith.constant 0 : index
    %c0_11 = arith.constant 0 : index
    %23 = vector.load %arg7[%c0_10, %c0_11] : memref<16x128xf32, #tpu.memory_space<vmem>>, vector<16x128xf32>
    %24 = arith.truncf %22 : vector<16x512xf32> to vector<16x512xbf16>
    %c0_12 = arith.constant 0 : index
    %c0_13 = arith.constant 0 : index
    %25 = vector.load %arg5[%c0_12, %c0_13] : memref<512x128xbf16, #tpu.memory_space<vmem>>, vector<512x128xbf16>
    %cst_14 = arith.constant dense<0.000000e+00> : vector<16x128xf32>
    %26 = tpu.matmul %24, %25, %cst_14 {dimension_numbers = #tpu.dot_dimension_numbers<[1], [0], [0], [1], [0, 0, 1, 1], [], []>} : vector<16x512xbf16>, vector<512x128xbf16>, vector<16x128xf32> -> vector<16x128xf32>
    %27 = arith.addf %23, %26 : vector<16x128xf32>
    %c0_15 = arith.constant 0 : index
    %c0_16 = arith.constant 0 : index
    %28 = vector.load %arg7[%c0_15, %c0_16] : memref<16x128xf32, #tpu.memory_space<vmem>>, vector<16x128xf32>
    tpu.vector_store %arg7[%c0_15, %c0_16], %27 {strides = array<i32>} : memref<16x128xf32, #tpu.memory_space<vmem>>, vector<16x128xf32>,
    return
  }
  func.func @transform_0(%arg0: i32, %arg1: i32) -> (i32, i32) {
    %c0_i32 = arith.constant 0 : i32
    %c0_i32_0 = arith.constant 0 : i32
    return %arg0, %c0_i32 : i32, i32
  }
  func.func @transform_1(%arg0: i32, %arg1: i32) -> (i32, i32) {
    %c0_i32 = arith.constant 0 : i32
    %c0_i32_0 = arith.constant 0 : i32
    return %c0_i32, %arg1 : i32, i32
  }
  func.func @transform_2(%arg0: i32, %arg1: i32) -> (i32, i32) {
    %c0_i32 = arith.constant 0 : i32
    %c0_i32_0 = arith.constant 0 : i32
    return %c0_i32, %arg1 : i32, i32
  }
  func.func @transform_3(%arg0: i32, %arg1: i32) -> (i32, i32) {
    %c0_i32 = arith.constant 0 : i32
    %c0_i32_0 = arith.constant 0 : i32
    return %arg1, %c0_i32 : i32, i32
  }
  func.func @transform_4(%arg0: i32, %arg1: i32) -> (i32, i32) {
    %c0_i32 = arith.constant 0 : i32
    %c0_i32_0 = arith.constant 0 : i32
    %c0_i32_1 = arith.constant 0 : i32
    return %c0_i32, %c0_i32_0 : i32, i32
  }
  func.func @transform_5(%arg0: i32, %arg1: i32) -> (i32, i32) {
    %c0_i32 = arith.constant 0 : i32
    %c0_i32_0 = arith.constant 0 : i32
    return %arg0, %c0_i32 : i32, i32
  }
}

</mosaic_0001>

<llo_original>
// kernel: tpu_custom_call.1
$region0: #{tpu_custom_call.1}
  #allocation0 [shape = 'u32[]', space=smem, size = 0x4, offset = 0x4, fixed_abs, tag = 'smem constant byte address 0x4 - core index']
  #allocation1 [shape = 'u32[72,128]{1,0:T(1,128)}', space=vmem, size = 0x9000, scoped, tag = 'internal scratch']
  %s0 = inlined_call_operand.hbm [shape: f32[16,128], index: 0, kind: input, shape index: {}]
  %s1 = inlined_call_operand.hbm [shape: bf16[128,512], index: 1, kind: input, shape index: {}]
  %s2 = inlined_call_operand.hbm [shape: f32[1,512], index: 2, kind: input, shape index: {}]
  %s3 = inlined_call_operand.hbm [shape: bf16[512,128], index: 3, kind: input, shape index: {}]
  %s4 = inlined_call_operand.vmem [shape: f32[1,128], index: 4, kind: input, shape index: {}]
  %s5 = inlined_call_operand.hbm [shape: f32[16,128], index: 5, kind: output, shape index: {}]
  %s6 = sld [smem:[#allocation0]]
  $region50: #{tpu_custom_call.1} parent=0
    _
  %s8 = ssub.s32 1, %s6
  %s9 = scalar_select 0, %s8, %s6
  $region1: #{tpu_custom_call.1} parent=0
    #allocation2 [shape = 'u8[8192]{0}', space=vmem, size = 0x2000, scoped, tag = 'input window, operand 0, single buffered']
    #allocation3 [shape = 's32[1]{0}', space=sflag, size = 0x4, scoped, tag = 'scoped memory for tpu_custom_call.1']
    #allocation4 [shape = 's32[1]{0}', space=sflag, size = 0x4, scoped, tag = 'scoped memory for tpu_custom_call.1']
    #allocation5 [shape = 'u8[131072]{0}', space=vmem, size = 0x20000, scoped, tag = 'input window, operand 1, single buffered']
    #allocation6 [shape = 's32[1]{0}', space=sflag, size = 0x4, scoped, tag = 'scoped memory for tpu_custom_call.1']
    #allocation7 [shape = 'u8[2048]{0}', space=vmem, size = 0x800, scoped, tag = 'input window, operand 2, single buffered']
    #allocation8 [shape = 'u8[131072]{0}', space=vmem, size = 0x20000, scoped, tag = 'input window, operand 3, single buffered']
    #allocation9 [shape = 's32[1]{0}', space=sflag, size = 0x4, scoped, tag = 'scoped memory for tpu_custom_call.1']
    #allocation10 [shape = 'u8[8192]{0}', space=vmem, size = 0x2000, scoped, tag = 'output window, operand 0, single buffered']
    %10 = vsyncpa [#allocation3], 0
    %11 = vsyncpa [#allocation6], 0
    %12 = vsyncpa [#allocation9], 0
    %13 = vsyncpa [#allocation4], 0
    // Predicated region
    $region2: #{tpu_custom_call.1} parent=1 // pred_check
      _
    $region3: #{tpu_custom_call.1} parent=1 // pred_check_branch
      %15 = sbr.rel (0) target = $region5
    $region4: #{tpu_custom_call.1} parent=1 // pred_region
      %17 = vsyncadd [#allocation3], 0
      %s18 = sshll.u32 %s0, 4
      %s19 = int_to_ptr.hbm [resolvable:$true] %s18
      %s20 = sshll.u32 [#allocation2], 4
      %s21 = int_to_ptr.vmem [resolvable:$true] %s20
      %26 = dma.hbm_to_vmem [thread:$0]  %s19, 256, %s21, [#allocation3], 128, 128, 8
    $region5: #{tpu_custom_call.1} parent=1 // pred_fallthru
      _
    // Predicated region
    $region6: #{tpu_custom_call.1} parent=1 // pred_check
      _
    $region7: #{tpu_custom_call.1} parent=1 // pred_check_branch
      %28 = sbr.rel (0) target = $region9
    $region8: #{tpu_custom_call.1} parent=1 // pred_region
      %30 = vsyncadd [#allocation6], 0
      %s31 = sshll.u32 %s1, 4
      %s32 = int_to_ptr.hbm [resolvable:$true] %s31
      %s33 = sshll.u32 [#allocation5], 4
      %s34 = int_to_ptr.vmem [resolvable:$true] %s33
      %39 = dma.hbm_to_vmem [thread:$0]  %s32, 4096, %s34, [#allocation6], 256, 256, 16
    $region9: #{tpu_custom_call.1} parent=1 // pred_fallthru
      _
    // Predicated region
    $region10: #{tpu_custom_call.1} parent=1 // pred_check
      _
    $region11: #{tpu_custom_call.1} parent=1 // pred_check_branch
      %41 = sbr.rel (0) target = $region13
    $region12: #{tpu_custom_call.1} parent=1 // pred_region
      %43 = vsyncadd [#allocation6], 0
      %s45 = sshll.u32 %s2, 4
      %s46 = int_to_ptr.hbm [resolvable:$true] %s45
      %s47 = sshll.u32 [#allocation7], 4
      %s48 = int_to_ptr.vmem [resolvable:$true] %s47
      %50 = dma.hbm_to_vmem [thread:$0]  %s46, 64, %s48, [#allocation6]
    $region13: #{tpu_custom_call.1} parent=1 // pred_fallthru
      _
    // Predicated region
    $region14: #{tpu_custom_call.1} parent=1 // pred_check
      _
    $region15: #{tpu_custom_call.1} parent=1 // pred_check_branch
      %52 = sbr.rel (0) target = $region17
    $region16: #{tpu_custom_call.1} parent=1 // pred_region
      %54 = vsyncadd [#allocation9], 0
      %s55 = sshll.u32 %s3, 4
      %s56 = int_to_ptr.hbm [resolvable:$true] %s55
      %s57 = sshll.u32 [#allocation8], 4
      %s58 = int_to_ptr.vmem [resolvable:$true] %s57
      %63 = dma.hbm_to_vmem [thread:$0]  %s56, 4096, %s58, [#allocation9], 64, 64, 4
    $region17: #{tpu_custom_call.1} parent=1 // pred_fallthru
      _
    // Predicated region
    $region18: #{tpu_custom_call.1} parent=1 // pred_check
      _
    $region19: #{tpu_custom_call.1} parent=1 // pred_check_branch
      %65 = sbr.rel (0) target = $region21
    $region20: #{tpu_custom_call.1} parent=1 // pred_region
      _
    $region21: #{tpu_custom_call.1} parent=1 // pred_fallthru
      _
    // Predicated region
    $region22: #{tpu_custom_call.1} parent=1 // pred_check
      _
    $region23: #{tpu_custom_call.1} parent=1 // pred_check_branch
      %67 = sbr.rel (0) target = $region25
    $region24: #{tpu_custom_call.1} parent=1 // pred_region
      %69 = dma.done [#allocation3], 256
    $region25: #{tpu_custom_call.1} parent=1 // pred_fallthru
      _
    // Predicated region
    $region26: #{tpu_custom_call.1} parent=1 // pred_check
      _
    $region27: #{tpu_custom_call.1} parent=1 // pred_check_branch
      %71 = sbr.rel (0) target = $region29
    $region28: #{tpu_custom_call.1} parent=1 // pred_region
      %73 = dma.done [#allocation6], 4096
    $region29: #{tpu_custom_call.1} parent=1 // pred_fallthru
      _
    // Predicated region
    $region30: #{tpu_custom_call.1} parent=1 // pred_check
      _
    $region31: #{tpu_custom_call.1} parent=1 // pred_check_branch
      %75 = sbr.rel (0) target = $region33
    $region32: #{tpu_custom_call.1} parent=1 // pred_region
      %77 = dma.done [#allocation6], 64
    $region33: #{tpu_custom_call.1} parent=1 // pred_fallthru
      _
    // Predicated region
    $region34: #{tpu_custom_call.1} parent=1 // pred_check
      _
    $region35: #{tpu_custom_call.1} parent=1 // pred_check_branch
      %79 = sbr.rel (0) target = $region37
    $region36: #{tpu_custom_call.1} parent=1 // pred_region
      %81 = dma.done [#allocation9], 4096
    $region37: #{tpu_custom_call.1} parent=1 // pred_fallthru
      _
    %p82 = scmp.eq.s32.totalorder 0, 0
    // Predicated region
    $region38: #{tpu_custom_call.1} parent=1 // pred_check
      %p83 = pneg %p82
    $region39: #{tpu_custom_call.1} parent=1 // pred_check_branch
      %85 = sbr.rel (%p83) target = $region41
    $region40: #{tpu_custom_call.1} parent=1 // pred_region
      %v86 = vld [vmem:[%s4] sm:$0x1]
      %v88 = vperm.slane %v86, 0
      %90 = vst [vmem:[#allocation10] sm:$0xff] %v88
      %91 = vst [vmem:[#allocation10 + $0x8] sm:$0xff] %v88
    $region41: #{tpu_custom_call.1} parent=1 // pred_fallthru
      _
    %v92 = vld [vmem:[#allocation2] sm:$0xff]
    %v93 = vld [vmem:[#allocation2 + $0x8] sm:$0xff]
    %v94 = vpack.c.bf16 %v93, %v92
    %v95 = vld [vmem:[#allocation5] sm:$0xff]
    %v96 = vld [vmem:[#allocation5 + $0x8] sm:$0xff]
    %v97 = vld [vmem:[#allocation5 + $0x10] sm:$0xff]
    %v98 = vld [vmem:[#allocation5 + $0x18] sm:$0xff]
    %v99 = vld [vmem:[#allocation5 + $0x20] sm:$0xff]
    %v100 = vld [vmem:[#allocation5 + $0x28] sm:$0xff]
    %v101 = vld [vmem:[#allocation5 + $0x30] sm:$0xff]
    %v102 = vld [vmem:[#allocation5 + $0x38] sm:$0xff]
    %v103 = vld [vmem:[#allocation5 + $0x40] sm:$0xff]
    %v104 = vld [vmem:[#allocation5 + $0x48] sm:$0xff]
    %v105 = vld [vmem:[#allocation5 + $0x50] sm:$0xff]
    %v106 = vld [vmem:[#allocation5 + $0x58] sm:$0xff]
    %v107 = vld [vmem:[#allocation5 + $0x60] sm:$0xff]
    %v108 = vld [vmem:[#allocation5 + $0x68] sm:$0xff]
    %v109 = vld [vmem:[#allocation5 + $0x70] sm:$0xff]
    %v110 = vld [vmem:[#allocation5 + $0x78] sm:$0xff]
    %v111 = vld [vmem:[#allocation5 + $0x80] sm:$0xff]
    %v112 = vld [vmem:[#allocation5 + $0x88] sm:$0xff]
    %v113 = vld [vmem:[#allocation5 + $0x90] sm:$0xff]
    %v114 = vld [vmem:[#allocation5 + $0x98] sm:$0xff]
    %v115 = vld [vmem:[#allocation5 + $0xa0] sm:$0xff]
    %v116 = vld [vmem:[#allocation5 + $0xa8] sm:$0xff]
    %v117 = vld [vmem:[#allocation5 + $0xb0] sm:$0xff]
    %v118 = vld [vmem:[#allocation5 + $0xb8] sm:$0xff]
    %v119 = vld [vmem:[#allocation5 + $0xc0] sm:$0xff]
    %v120 = vld [vmem:[#allocation5 + $0xc8] sm:$0xff]
    %v121 = vld [vmem:[#allocation5 + $0xd0] sm:$0xff]
    %v122 = vld [vmem:[#allocation5 + $0xd8] sm:$0xff]
    %v123 = vld [vmem:[#allocation5 + $0xe0] sm:$0xff]
    %v124 = vld [vmem:[#allocation5 + $0xe8] sm:$0xff]
    %v125 = vld [vmem:[#allocation5 + $0xf0] sm:$0xff]
    %v126 = vld [vmem:[#allocation5 + $0xf8] sm:$0xff]
    %v127 = vld [vmem:[#allocation7] sm:$0xf]
    %v129 = vperm.slane %v127, 0
    %v130 = vperm.slane %v127, 1
    %v131 = vperm.slane %v127, 2
    %v132 = vperm.slane %v127, 3
    %v169 = vunpack.c.l.b16 %v95
    %v170 = vunpack.c.h.b16 %v95
    %v171 = vunpack.c.l.b16 %v96
    %v172 = vunpack.c.h.b16 %v96
    %v173 = vunpack.c.l.b16 %v97
    %v174 = vunpack.c.h.b16 %v97
    %v175 = vunpack.c.l.b16 %v98
    %v176 = vunpack.c.h.b16 %v98
    %v177 = vunpack.c.l.b16 %v99
    %v178 = vunpack.c.h.b16 %v99
    %v179 = vunpack.c.l.b16 %v100
    %v180 = vunpack.c.h.b16 %v100
    %v181 = vunpack.c.l.b16 %v101
    %v182 = vunpack.c.h.b16 %v101
    %v183 = vunpack.c.l.b16 %v102
    %v184 = vunpack.c.h.b16 %v102
    %v185 = vunpack.c.l.b16 %v103
    %v186 = vunpack.c.h.b16 %v103
    %v187 = vunpack.c.l.b16 %v104
    %v188 = vunpack.c.h.b16 %v104
    %v189 = vunpack.c.l.b16 %v105
    %v190 = vunpack.c.h.b16 %v105
    %v191 = vunpack.c.l.b16 %v106
    %v192 = vunpack.c.h.b16 %v106
    %v193 = vunpack.c.l.b16 %v107
    %v194 = vunpack.c.h.b16 %v107
    %v195 = vunpack.c.l.b16 %v108
    %v196 = vunpack.c.h.b16 %v108
    %v197 = vunpack.c.l.b16 %v109
    %v198 = vunpack.c.h.b16 %v109
    %v199 = vunpack.c.l.b16 %v110
    %v200 = vunpack.c.h.b16 %v110
    %v201 = vunpack.c.l.b16 %v111
    %v202 = vunpack.c.h.b16 %v111
    %v203 = vunpack.c.l.b16 %v112
    %v204 = vunpack.c.h.b16 %v112
    %v205 = vunpack.c.l.b16 %v113
    %v206 = vunpack.c.h.b16 %v113
    %v207 = vunpack.c.l.b16 %v114
    %v208 = vunpack.c.h.b16 %v114
    %v209 = vunpack.c.l.b16 %v115
    %v210 = vunpack.c.h.b16 %v115
    %v211 = vunpack.c.l.b16 %v116
    %v212 = vunpack.c.h.b16 %v116
    %v213 = vunpack.c.l.b16 %v117
    %v214 = vunpack.c.h.b16 %v117
    %v215 = vunpack.c.l.b16 %v118
    %v216 = vunpack.c.h.b16 %v118
    %v217 = vunpack.c.l.b16 %v119
    %v218 = vunpack.c.h.b16 %v119
    %v219 = vunpack.c.l.b16 %v120
    %v220 = vunpack.c.h.b16 %v120
    %v221 = vunpack.c.l.b16 %v121
    %v222 = vunpack.c.h.b16 %v121
    %v223 = vunpack.c.l.b16 %v122
    %v224 = vunpack.c.h.b16 %v122
    %v225 = vunpack.c.l.b16 %v123
    %v226 = vunpack.c.h.b16 %v123
    %v227 = vunpack.c.l.b16 %v124
    %v228 = vunpack.c.h.b16 %v124
    %v229 = vunpack.c.l.b16 %v125
    %v230 = vunpack.c.h.b16 %v125
    %v231 = vunpack.c.l.b16 %v126
    %v232 = vunpack.c.h.b16 %v126
    %v233 = vpack.c.b16 %v173, %v169
    %v234 = vpack.c.b16 %v174, %v170
    %v235 = vpack.c.b16 %v175, %v171
    %v236 = vpack.c.b16 %v176, %v172
    %v237 = vpack.c.b16 %v181, %v177
    %v238 = vpack.c.b16 %v182, %v178
    %v239 = vpack.c.b16 %v183, %v179
    %v240 = vpack.c.b16 %v184, %v180
    %v241 = vpack.c.b16 %v189, %v185
    %v242 = vpack.c.b16 %v190, %v186
    %v243 = vpack.c.b16 %v191, %v187
    %v244 = vpack.c.b16 %v192, %v188
    %v245 = vpack.c.b16 %v197, %v193
    %v246 = vpack.c.b16 %v198, %v194
    %v247 = vpack.c.b16 %v199, %v195
    %v248 = vpack.c.b16 %v200, %v196
    %v249 = vpack.c.b16 %v205, %v201
    %v250 = vpack.c.b16 %v206, %v202
    %v251 = vpack.c.b16 %v207, %v203
    %v252 = vpack.c.b16 %v208, %v204
    %v253 = vpack.c.b16 %v213, %v209
    %v254 = vpack.c.b16 %v214, %v210
    %v255 = vpack.c.b16 %v215, %v211
    %v256 = vpack.c.b16 %v216, %v212
    %v257 = vpack.c.b16 %v221, %v217
    %v258 = vpack.c.b16 %v222, %v218
    %v259 = vpack.c.b16 %v223, %v219
    %v260 = vpack.c.b16 %v224, %v220
    %v261 = vpack.c.b16 %v229, %v225
    %v262 = vpack.c.b16 %v230, %v226
    %v263 = vpack.c.b16 %v231, %v227
    %v264 = vpack.c.b16 %v232, %v228
    %297 = vmatpush.bf16.msra.mxu0 %v261
    %298 = vmatpush.bf16.msra.mxu0 %v257
    %299 = vmatpush.bf16.msra.mxu0 %v253
    %300 = vmatpush.bf16.msra.mxu0 %v249
    %301 = vmatpush.bf16.msra.mxu0 %v245
    %302 = vmatpush.bf16.msra.mxu0 %v241
    %303 = vmatpush.bf16.msra.mxu0 %v237
    %304 = vmatpush.bf16.msra.mxu0 %v233
    %305 = vmatmul.bf16.gmra.mxu0 %v94
    %v306 = vpop.f32.mrf.mxu0
    %v307 = vadd.f32 %v129, %v306
    %v308 = vpop.f32.mrf.mxu0
    %v309 = vadd.f32 %v129, %v308
    %310 = vdwg.mxu0
    %311 = vmatpush.bf16.msra.mxu0 %v262
    %312 = vmatpush.bf16.msra.mxu0 %v258
    %313 = vmatpush.bf16.msra.mxu0 %v254
    %314 = vmatpush.bf16.msra.mxu0 %v250
    %315 = vmatpush.bf16.msra.mxu0 %v246
    %316 = vmatpush.bf16.msra.mxu0 %v242
    %317 = vmatpush.bf16.msra.mxu0 %v238
    %318 = vmatpush.bf16.msra.mxu0 %v234
    %319 = vmatmul.bf16.gmra.mxu0 %v94
    %v320 = vpop.f32.mrf.mxu0
    %v321 = vadd.f32 %v130, %v320
    %v322 = vpop.f32.mrf.mxu0
    %v323 = vadd.f32 %v130, %v322
    %324 = vdwg.mxu0
    %325 = vmatpush.bf16.msra.mxu0 %v263
    %326 = vmatpush.bf16.msra.mxu0 %v259
    %327 = vmatpush.bf16.msra.mxu0 %v255
    %328 = vmatpush.bf16.msra.mxu0 %v251
    %329 = vmatpush.bf16.msra.mxu0 %v247
    %330 = vmatpush.bf16.msra.mxu0 %v243
    %331 = vmatpush.bf16.msra.mxu0 %v239
    %332 = vmatpush.bf16.msra.mxu0 %v235
    %333 = vmatmul.bf16.gmra.mxu0 %v94
    %v334 = vpop.f32.mrf.mxu0
    %v335 = vadd.f32 %v131, %v334
    %v336 = vpop.f32.mrf.mxu0
    %v337 = vadd.f32 %v131, %v336
    %338 = vdwg.mxu0
    %339 = vmatpush.bf16.msra.mxu0 %v264
    %340 = vmatpush.bf16.msra.mxu0 %v260
    %341 = vmatpush.bf16.msra.mxu0 %v256
    %342 = vmatpush.bf16.msra.mxu0 %v252
    %343 = vmatpush.bf16.msra.mxu0 %v248
    %344 = vmatpush.bf16.msra.mxu0 %v244
    %345 = vmatpush.bf16.msra.mxu0 %v240
    %346 = vmatpush.bf16.msra.mxu0 %v236
    %347 = vmatmul.bf16.gmra.mxu0 %v94
    %v348 = vpop.f32.mrf.mxu0
    %v349 = vadd.f32 %v132, %v348
    %v350 = vpop.f32.mrf.mxu0
    %v351 = vadd.f32 %v132, %v350
    %352 = vdwg.mxu0
    %v353 = vmul.f32 %v307, %v307
    %v354 = vmul.f32 %v321, %v321
    %v355 = vmul.f32 %v335, %v335
    %v356 = vmul.f32 %v349, %v349
    %v357 = vmul.f32 %v309, %v309
    %v358 = vmul.f32 %v323, %v323
    %v359 = vmul.f32 %v337, %v337
    %v360 = vmul.f32 %v351, %v351
    %v361 = vmul.f32 %v307, %v353
    %v362 = vmul.f32 %v321, %v354
    %v363 = vmul.f32 %v335, %v355
    %v364 = vmul.f32 %v349, %v356
    %v365 = vmul.f32 %v309, %v357
    %v366 = vmul.f32 %v323, %v358
    %v367 = vmul.f32 %v337, %v359
    %v368 = vmul.f32 %v351, %v360
    %v369 = vmul.f32 %v361, 0.044715
    %v370 = vmul.f32 %v362, 0.044715
    %v371 = vmul.f32 %v363, 0.044715
    %v372 = vmul.f32 %v364, 0.044715
    %v373 = vmul.f32 %v365, 0.044715
    %v374 = vmul.f32 %v366, 0.044715
    %v375 = vmul.f32 %v367, 0.044715
    %v376 = vmul.f32 %v368, 0.044715
    %v377 = vadd.f32 %v307, %v369
    %v378 = vadd.f32 %v321, %v370
    %v379 = vadd.f32 %v335, %v371
    %v380 = vadd.f32 %v349, %v372
    %v381 = vadd.f32 %v309, %v373
    %v382 = vadd.f32 %v323, %v374
    %v383 = vadd.f32 %v337, %v375
    %v384 = vadd.f32 %v351, %v376
    %v385 = vmul.f32 %v377, 0.7978846
    %v386 = vmul.f32 %v378, 0.7978846
    %v387 = vmul.f32 %v379, 0.7978846
    %v388 = vmul.f32 %v380, 0.7978846
    %v389 = vmul.f32 %v381, 0.7978846
    %v390 = vmul.f32 %v382, 0.7978846
    %v391 = vmul.f32 %v383, 0.7978846
    %v392 = vmul.f32 %v384, 0.7978846
    %v393 = vtanh.pop %v385
    %v394 = vtanh.pop %v386
    %v395 = vtanh.pop %v387
    %v396 = vtanh.pop %v388
    %v397 = vtanh.pop %v389
    %v398 = vtanh.pop %v390
    %v399 = vtanh.pop %v391
    %v400 = vtanh.pop %v392
    %v401 = vadd.f32 %v393, 1.0
    %v402 = vadd.f32 %v394, 1.0
    %v403 = vadd.f32 %v395, 1.0
    %v404 = vadd.f32 %v396, 1.0
    %v405 = vadd.f32 %v397, 1.0
    %v406 = vadd.f32 %v398, 1.0
    %v407 = vadd.f32 %v399, 1.0
    %v408 = vadd.f32 %v400, 1.0
    %v409 = vmul.f32 %v401, 0.5
    %v410 = vmul.f32 %v402, 0.5
    %v411 = vmul.f32 %v403, 0.5
    %v412 = vmul.f32 %v404, 0.5
    %v413 = vmul.f32 %v405, 0.5
    %v414 = vmul.f32 %v406, 0.5
    %v415 = vmul.f32 %v407, 0.5
    %v416 = vmul.f32 %v408, 0.5
    %v417 = vmul.f32 %v307, %v409
    %v418 = vmul.f32 %v321, %v410
    %v419 = vmul.f32 %v335, %v411
    %v420 = vmul.f32 %v349, %v412
    %v421 = vmul.f32 %v309, %v413
    %v422 = vmul.f32 %v323, %v414
    %v423 = vmul.f32 %v337, %v415
    %v424 = vmul.f32 %v351, %v416
    %v425 = vld [vmem:[#allocation10] sm:$0xff]
    %v426 = vld [vmem:[#allocation10 + $0x8] sm:$0xff]
    %v427 = vpack.c.bf16 %v421, %v417
    %v428 = vpack.c.bf16 %v422, %v418
    %v429 = vpack.c.bf16 %v423, %v419
    %v430 = vpack.c.bf16 %v424, %v420
    %v431 = vld [vmem:[#allocation8] sm:$0xf]
    %v432 = vld [vmem:[#allocation8 + $0x4] sm:$0xf]
    %v433 = vld [vmem:[#allocation8 + $0x8] sm:$0xf]
    %v434 = vld [vmem:[#allocation8 + $0xc] sm:$0xf]
    %v435 = vld [vmem:[#allocation8 + $0x10] sm:$0xf]
    %v436 = vld [vmem:[#allocation8 + $0x14] sm:$0xf]
    %v437 = vld [vmem:[#allocation8 + $0x18] sm:$0xf]
    %v438 = vld [vmem:[#allocation8 + $0x1c] sm:$0xf]
    %v439 = vld [vmem:[#allocation8 + $0x20] sm:$0xf]
    %v440 = vld [vmem:[#allocation8 + $0x24] sm:$0xf]
    %v441 = vld [vmem:[#allocation8 + $0x28] sm:$0xf]
    %v442 = vld [vmem:[#allocation8 + $0x2c] sm:$0xf]
    %v443 = vld [vmem:[#allocation8 + $0x30] sm:$0xf]
    %v444 = vld [vmem:[#allocation8 + $0x34] sm:$0xf]
    %v445 = vld [vmem:[#allocation8 + $0x38] sm:$0xf]
    %v446 = vld [vmem:[#allocation8 + $0x3c] sm:$0xf]
    %v447 = vld [vmem:[#allocation8 + $0x40] sm:$0xf]
    %v448 = vld [vmem:[#allocation8 + $0x44] sm:$0xf]
    %v449 = vld [vmem:[#allocation8 + $0x48] sm:$0xf]
    %v450 = vld [vmem:[#allocation8 + $0x4c] sm:$0xf]
    %v451 = vld [vmem:[#allocation8 + $0x50] sm:$0xf]
    %v452 = vld [vmem:[#allocation8 + $0x54] sm:$0xf]
    %v453 = vld [vmem:[#allocation8 + $0x58] sm:$0xf]
    %v454 = vld [vmem:[#allocation8 + $0x5c] sm:$0xf]
    %v455 = vld [vmem:[#allocation8 + $0x60] sm:$0xf]
    %v456 = vld [vmem:[#allocation8 + $0x64] sm:$0xf]
    %v457 = vld [vmem:[#allocation8 + $0x68] sm:$0xf]
    %v458 = vld [vmem:[#allocation8 + $0x6c] sm:$0xf]
    %v459 = vld [vmem:[#allocation8 + $0x70] sm:$0xf]
    %v460 = vld [vmem:[#allocation8 + $0x74] sm:$0xf]
    %v461 = vld [vmem:[#allocation8 + $0x78] sm:$0xf]
    %v462 = vld [vmem:[#allocation8 + $0x7c] sm:$0xf]
    %v463 = vld [vmem:[#allocation8 + $0x80] sm:$0xf]
    %v464 = vld [vmem:[#allocation8 + $0x84] sm:$0xf]
    %v465 = vld [vmem:[#allocation8 + $0x88] sm:$0xf]
    %v466 = vld [vmem:[#allocation8 + $0x8c] sm:$0xf]
    %v467 = vld [vmem:[#allocation8 + $0x90] sm:$0xf]
    %v468 = vld [vmem:[#allocation8 + $0x94] sm:$0xf]
    %v469 = vld [vmem:[#allocation8 + $0x98] sm:$0xf]
    %v470 = vld [vmem:[#allocation8 + $0x9c] sm:$0xf]
    %v471 = vld [vmem:[#allocation8 + $0xa0] sm:$0xf]
    %v472 = vld [vmem:[#allocation8 + $0xa4] sm:$0xf]
    %v473 = vld [vmem:[#allocation8 + $0xa8] sm:$0xf]
    %v474 = vld [vmem:[#allocation8 + $0xac] sm:$0xf]
    %v475 = vld [vmem:[#allocation8 + $0xb0] sm:$0xf]
    %v476 = vld [vmem:[#allocation8 + $0xb4] sm:$0xf]
    %v477 = vld [vmem:[#allocation8 + $0xb8] sm:$0xf]
    %v478 = vld [vmem:[#allocation8 + $0xbc] sm:$0xf]
    %v479 = vld [vmem:[#allocation8 + $0xc0] sm:$0xf]
    %v480 = vld [vmem:[#allocation8 + $0xc4] sm:$0xf]
    %v481 = vld [vmem:[#allocation8 + $0xc8] sm:$0xf]
    %v482 = vld [vmem:[#allocation8 + $0xcc] sm:$0xf]
    %v483 = vld [vmem:[#allocation8 + $0xd0] sm:$0xf]
    %v484 = vld [vmem:[#allocation8 + $0xd4] sm:$0xf]
    %v485 = vld [vmem:[#allocation8 + $0xd8] sm:$0xf]
    %v486 = vld [vmem:[#allocation8 + $0xdc] sm:$0xf]
    %v487 = vld [vmem:[#allocation8 + $0xe0] sm:$0xf]
    %v488 = vld [vmem:[#allocation8 + $0xe4] sm:$0xf]
    %v489 = vld [vmem:[#allocation8 + $0xe8] sm:$0xf]
    %v490 = vld [vmem:[#allocation8 + $0xec] sm:$0xf]
    %v491 = vld [vmem:[#allocation8 + $0xf0] sm:$0xf]
    %v492 = vld [vmem:[#allocation8 + $0xf4] sm:$0xf]
    %v493 = vld [vmem:[#allocation8 + $0xf8] sm:$0xf]
    %v494 = vld [vmem:[#allocation8 + $0xfc] sm:$0xf]
    %v559 = vunpack.c.l.b16 %v431
    %v560 = vunpack.c.l.b16 %v432
    %v561 = vunpack.c.l.b16 %v433
    %v562 = vunpack.c.l.b16 %v434
    %v563 = vunpack.c.l.b16 %v435
    %v564 = vunpack.c.l.b16 %v436
    %v565 = vunpack.c.l.b16 %v437
    %v566 = vunpack.c.l.b16 %v438
    %v567 = vunpack.c.l.b16 %v439
    %v568 = vunpack.c.l.b16 %v440
    %v569 = vunpack.c.l.b16 %v441
    %v570 = vunpack.c.l.b16 %v442
    %v571 = vunpack.c.l.b16 %v443
    %v572 = vunpack.c.l.b16 %v444
    %v573 = vunpack.c.l.b16 %v445
    %v574 = vunpack.c.l.b16 %v446
    %v575 = vunpack.c.l.b16 %v447
    %v576 = vunpack.c.l.b16 %v448
    %v577 = vunpack.c.l.b16 %v449
    %v578 = vunpack.c.l.b16 %v450
    %v579 = vunpack.c.l.b16 %v451
    %v580 = vunpack.c.l.b16 %v452
    %v581 = vunpack.c.l.b16 %v453
    %v582 = vunpack.c.l.b16 %v454
    %v583 = vunpack.c.l.b16 %v455
    %v584 = vunpack.c.l.b16 %v456
    %v585 = vunpack.c.l.b16 %v457
    %v586 = vunpack.c.l.b16 %v458
    %v587 = vunpack.c.l.b16 %v459
    %v588 = vunpack.c.l.b16 %v460
    %v589 = vunpack.c.l.b16 %v461
    %v590 = vunpack.c.l.b16 %v462
    %v591 = vunpack.c.l.b16 %v463
    %v592 = vunpack.c.l.b16 %v464
    %v593 = vunpack.c.l.b16 %v465
    %v594 = vunpack.c.l.b16 %v466
    %v595 = vunpack.c.l.b16 %v467
    %v596 = vunpack.c.l.b16 %v468
    %v597 = vunpack.c.l.b16 %v469
    %v598 = vunpack.c.l.b16 %v470
    %v599 = vunpack.c.l.b16 %v471
    %v600 = vunpack.c.l.b16 %v472
    %v601 = vunpack.c.l.b16 %v473
    %v602 = vunpack.c.l.b16 %v474
    %v603 = vunpack.c.l.b16 %v475
    %v604 = vunpack.c.l.b16 %v476
    %v605 = vunpack.c.l.b16 %v477
    %v606 = vunpack.c.l.b16 %v478
    %v607 = vunpack.c.l.b16 %v479
    %v608 = vunpack.c.l.b16 %v480
    %v609 = vunpack.c.l.b16 %v481
    %v610 = vunpack.c.l.b16 %v482
    %v611 = vunpack.c.l.b16 %v483
    %v612 = vunpack.c.l.b16 %v484
    %v613 = vunpack.c.l.b16 %v485
    %v614 = vunpack.c.l.b16 %v486
    %v615 = vunpack.c.l.b16 %v487
    %v616 = vunpack.c.l.b16 %v488
    %v617 = vunpack.c.l.b16 %v489
    %v618 = vunpack.c.l.b16 %v490
    %v619 = vunpack.c.l.b16 %v491
    %v620 = vunpack.c.l.b16 %v492
    %v621 = vunpack.c.l.b16 %v493
    %v622 = vunpack.c.l.b16 %v494
    %v623 = vpack.c.b16 %v560, %v559
    %v624 = vpack.c.b16 %v562, %v561
    %v625 = vpack.c.b16 %v564, %v563
    %v626 = vpack.c.b16 %v566, %v565
    %v627 = vpack.c.b16 %v568, %v567
    %v628 = vpack.c.b16 %v570, %v569
    %v629 = vpack.c.b16 %v572, %v571
    %v630 = vpack.c.b16 %v574, %v573
    %v631 = vpack.c.b16 %v576, %v575
    %v632 = vpack.c.b16 %v578, %v577
    %v633 = vpack.c.b16 %v580, %v579
    %v634 = vpack.c.b16 %v582, %v581
    %v635 = vpack.c.b16 %v584, %v583
    %v636 = vpack.c.b16 %v586, %v585
    %v637 = vpack.c.b16 %v588, %v587
    %v638 = vpack.c.b16 %v590, %v589
    %v639 = vpack.c.b16 %v592, %v591
    %v640 = vpack.c.b16 %v594, %v593
    %v641 = vpack.c.b16 %v596, %v595
    %v642 = vpack.c.b16 %v598, %v597
    %v643 = vpack.c.b16 %v600, %v599
    %v644 = vpack.c.b16 %v602, %v601
    %v645 = vpack.c.b16 %v604, %v603
    %v646 = vpack.c.b16 %v606, %v605
    %v647 = vpack.c.b16 %v608, %v607
    %v648 = vpack.c.b16 %v610, %v609
    %v649 = vpack.c.b16 %v612, %v611
    %v650 = vpack.c.b16 %v614, %v613
    %v651 = vpack.c.b16 %v616, %v615
    %v652 = vpack.c.b16 %v618, %v617
    %v653 = vpack.c.b16 %v620, %v619
    %v654 = vpack.c.b16 %v622, %v621
    %687 = vmatpush.bf16.msra.mxu0 %v630
    %688 = vmatpush.bf16.msra.mxu0 %v629
    %689 = vmatpush.bf16.msra.mxu0 %v628
    %690 = vmatpush.bf16.msra.mxu0 %v627
    %691 = vmatpush.bf16.msra.mxu0 %v626
    %692 = vmatpush.bf16.msra.mxu0 %v625
    %693 = vmatpush.bf16.msra.mxu0 %v624
    %694 = vmatpush.bf16.msra.mxu0 %v623
    %695 = vmatmul.bf16.gmra.mxu0 %v427
    %v696 = vpop.f32.mrf.mxu0
    %v697 = vadd.f32 0.0, %v696
    %v698 = vpop.f32.mrf.mxu0
    %v699 = vadd.f32 0.0, %v698
    %700 = vdwg.mxu0
    %701 = vmatpush.bf16.msra.mxu0 %v638
    %702 = vmatpush.bf16.msra.mxu0 %v637
    %703 = vmatpush.bf16.msra.mxu0 %v636
    %704 = vmatpush.bf16.msra.mxu0 %v635
    %705 = vmatpush.bf16.msra.mxu0 %v634
    %706 = vmatpush.bf16.msra.mxu0 %v633
    %707 = vmatpush.bf16.msra.mxu0 %v632
    %708 = vmatpush.bf16.msra.mxu0 %v631
    %709 = vmatmul.bf16.gmra.mxu0 %v428
    %v710 = vpop.f32.mrf.mxu0
    %v711 = vadd.f32 %v697, %v710
    %v712 = vpop.f32.mrf.mxu0
    %v713 = vadd.f32 %v699, %v712
    %714 = vdwg.mxu0
    %715 = vmatpush.bf16.msra.mxu0 %v646
    %716 = vmatpush.bf16.msra.mxu0 %v645
    %717 = vmatpush.bf16.msra.mxu0 %v644
    %718 = vmatpush.bf16.msra.mxu0 %v643
    %719 = vmatpush.bf16.msra.mxu0 %v642
    %720 = vmatpush.bf16.msra.mxu0 %v641
    %721 = vmatpush.bf16.msra.mxu0 %v640
    %722 = vmatpush.bf16.msra.mxu0 %v639
    %723 = vmatmul.bf16.gmra.mxu0 %v429
    %v724 = vpop.f32.mrf.mxu0
    %v725 = vadd.f32 %v711, %v724
    %v726 = vpop.f32.mrf.mxu0
    %v727 = vadd.f32 %v713, %v726
    %728 = vdwg.mxu0
    %729 = vmatpush.bf16.msra.mxu0 %v654
    %730 = vmatpush.bf16.msra.mxu0 %v653
    %731 = vmatpush.bf16.msra.mxu0 %v652
    %732 = vmatpush.bf16.msra.mxu0 %v651
    %733 = vmatpush.bf16.msra.mxu0 %v650
    %734 = vmatpush.bf16.msra.mxu0 %v649
    %735 = vmatpush.bf16.msra.mxu0 %v648
    %736 = vmatpush.bf16.msra.mxu0 %v647
    %737 = vmatmul.bf16.gmra.mxu0 %v430
    %v738 = vpop.f32.mrf.mxu0
    %v739 = vadd.f32 %v725, %v738
    %v740 = vpop.f32.mrf.mxu0
    %v741 = vadd.f32 %v727, %v740
    %742 = vdwg.mxu0
    %v743 = vadd.f32 %v425, %v739
    %v744 = vadd.f32 %v426, %v741
    %745 = vst [vmem:[#allocation10] sm:$0xff] %v743
    %746 = vst [vmem:[#allocation10 + $0x8] sm:$0xff] %v744
    // Predicated region
    $region42: #{tpu_custom_call.1} parent=1 // pred_check
      _
    $region43: #{tpu_custom_call.1} parent=1 // pred_check_branch
      %748 = sbr.rel (0) target = $region45
    $region44: #{tpu_custom_call.1} parent=1 // pred_region
      %750 = vsyncadd [#allocation4], 0
      %s751 = sshll.u32 [#allocation10], 4
      %s752 = int_to_ptr.vmem [resolvable:$true] %s751
      %s753 = sshll.u32 %s5, 4
      %s754 = int_to_ptr.hbm [resolvable:$true] %s753
      %759 = dma.vmem_to_hbm [thread:$0]  %s752, 256, %s754, [#allocation4], 128, 128, 8
    $region45: #{tpu_custom_call.1} parent=1 // pred_fallthru
      _
    // Predicated region
    $region46: #{tpu_custom_call.1} parent=1 // pred_check
      _
    $region47: #{tpu_custom_call.1} parent=1 // pred_check_branch
      %761 = sbr.rel (0) target = $region49
    $region48: #{tpu_custom_call.1} parent=1 // pred_region
      %763 = dma.done [#allocation4], 256
    $region49: #{tpu_custom_call.1} parent=1 // pred_fallthru
      _
    %764 = vsyncpa [#allocation3], 1
    %765 = vsyncpa [#allocation6], 1
    %766 = vsyncpa [#allocation9], 1
    %767 = vsyncpa [#allocation4], 1

</llo_original>
